<compile_context>
chip_gen: v5e
topology: v5e:2x2
jax: 0.10.0
libtpu: 0.0.40
codegen_flags: <defaults>
</compile_context>

<pallas_src>
import math

import jax
import jax.numpy as jnp
import numpy as np
from jax import lax
from jax.experimental import pallas as pl
from jax.experimental.pallas import tpu as pltpu


def _num_tensorcores():
    """Best-effort TensorCore-per-chip detection (2 on v7x, else 1)."""
    try:
        kind = (jax.devices()[0].device_kind or "").lower()
        if "v7" in kind or "tpu7" in kind:
            return 2
    except Exception:
        pass
    return 1


def _make_kernel(tb, b_chunk, nf_total, needs_mask):
    """Kernel closure.  tb = batch rows per block, b_chunk = inner chunk rows,
    nf_total = true (folded) batch length, needs_mask = whether the last block
    has out-of-range tail rows that must be zeroed before squaring."""
    n_chunks = tb // b_chunk

    def kernel(x_ref, s_ref, o_ref, acc_ref):
        # grid = (c_tiles, n_tiles); axis 1 is the batch-reduction axis.
        n = pl.program_id(1)

        @pl.when(n == 0)
        def _init():
            acc_ref[...] = jnp.zeros_like(acc_ref)

        base = n * tb

        def sq_sum(start, nrows):
            xb = x_ref[pl.ds(start, nrows), :, :].astype(jnp.float32)
            if needs_mask:
                # Global (folded) row index of every element; zero tail rows.
                row = (base + start
                       + lax.broadcasted_iota(jnp.int32, xb.shape, 0))
                xb = jnp.where(row < nf_total, xb, 0.0)
            return jnp.sum(xb * xb, axis=0)

        if n_chunks == 1:
            acc_ref[...] += sq_sum(0, tb)
        else:
            def body(i, part):
                start = pl.multiple_of(i * b_chunk, b_chunk)
                return part + sq_sum(start, b_chunk)

            part = lax.fori_loop(0, n_chunks, body,
                                 jnp.zeros(acc_ref.shape, jnp.float32),
                                 unroll=min(n_chunks, 8))
            acc_ref[...] += part

        @pl.when(n == pl.num_programs(1) - 1)
        def _finalize():
            # Segment-sum over irrep components (+ 1/dim and 1/N folded into S)
            # as a single small MXU matmul: (K, Df) @ (Df, tc).
            out = jnp.dot(s_ref[...], acc_ref[...],
                          preferred_element_type=jnp.float32)
            o_ref[...] = out.astype(o_ref.dtype)

    return kernel


def batch_mean_squared_norm(x, irrep_dims, scaled=True, *,
                            block_bytes=8 << 20,       # per-input-block byte budget
                            chunk_bytes=128 << 10,     # f32 working set per inner chunk
                            c_tile=None,               # override channel tile
                            num_tensorcores=None,      # override core count
                            vmem_limit_bytes=48 << 20,
                            out_dtype=None):
    """Pallas implementation of RefBatchMeanSquaredNorm.

    x          : [N, D, C] array, D == sum(irrep_dims)
    irrep_dims : per-irrep component dims (e.g. [1, 3, 5])
    scaled     : multiply each irrep's mean-square by 1/dim
    returns    : [K, C], K == len(irrep_dims)
    """
    N, D, C = x.shape
    K = len(irrep_dims)
    assert sum(irrep_dims) == D
    assert N > 0, "batch must be non-empty (division by N)"
    out_dtype = x.dtype if out_dtype is None else out_dtype
    itemsize = jnp.dtype(x.dtype).itemsize

    # ---- fold the tiny D axis into the sublane tile when possible (free view) ----
    sublane = {1: 32, 2: 16, 4: 8}.get(itemsize, 8)
    if D % sublane == 0:
        m = 1
    else:
        m0 = sublane // math.gcd(D, sublane)       # minimal fold making m*D sublane-aligned
        m = m0 if (N % m0 == 0) else 1              # never pad/copy; fall back to m=1
    Nf, Df = N // m, m * D
    if m > 1:
        x = x.reshape(Nf, Df, C)                    # layout-preserving merge of leading dims
    padded_Df = -(-Df // sublane) * sublane         # Df as laid out in VMEM sublanes

    # ---- channel tiling: 1 tile on single-TC chips, 2 contiguous halves on v7x ----
    if c_tile is not None:
        tc = c_tile
    else:
        cores = num_tensorcores if num_tensorcores is not None else _num_tensorcores()
        if cores >= 2 and C % 2 == 0 and (C // 2) % 128 == 0:
            tc = C // 2
        else:
            tc = C
    assert C % tc == 0 and (tc == C or tc % 128 == 0)
    c_tiles = C // tc

    # ---- batch blocking (no wrapper-side padding; tail masked in-kernel) ----
    row_bytes = padded_Df * tc * itemsize           # true VMEM bytes per batch row
    tb = max(1, block_bytes // row_bytes)
    tb = min(tb, Nf)
    b_chunk = max(1, min(tb, chunk_bytes // (padded_Df * tc * 4)))
    tb = b_chunk * max(1, tb // b_chunk)            # tb is a multiple of b_chunk
    n_tiles = -(-Nf // tb)
    needs_mask = (Nf % tb) != 0

    # ---- selection/scale matrix: S[k, j*D+d] = (1/dim if scaled else 1) / N ----
    s_base = np.zeros((K, D), dtype=np.float32)
    off = 0
    for k, dim in enumerate(irrep_dims):
        scale = (1.0 / dim if dim > 0 else 0.0) if scaled else 1.0
        s_base[k, off:off + dim] = scale / N        # fold the true 1/N here
        off += dim
    s = jnp.asarray(np.tile(s_base, (1, m)))        # (K, Df)

    grid_spec = pltpu.PrefetchScalarGridSpec(
        num_scalar_prefetch=0,
        grid=(c_tiles, n_tiles),                    # reduction axis last
        in_specs=[
            pl.BlockSpec((tb, Df, tc), lambda c, n: (n, 0, c)),   # streamed batch slab
            pl.BlockSpec((K, Df), lambda c, n: (0, 0)),           # selection matrix
        ],
        out_specs=pl.BlockSpec((K, tc), lambda c, n: (0, c)),     # resident across n
        scratch_shapes=[pltpu.VMEM((Df, tc), jnp.float32)],
    )

    return pl.pallas_call(
        _make_kernel(tb, b_chunk, Nf, needs_mask),
        out_shape=jax.ShapeDtypeStruct((K, C), out_dtype),
        grid_spec=grid_spec,
        compiler_params=pltpu.CompilerParams(
            dimension_semantics=("parallel", "arbitrary"),
            vmem_limit_bytes=vmem_limit_bytes,
        ),
    )(x, s)


def _reference(x, irrep_dims, scaled=True):
    """Plain-JAX reference mirroring the PyTorch module."""
    N = x.shape[0]
    outs = []
    off = 0
    for dim in irrep_dims:
        xk = x[:, off:off + dim, :].astype(jnp.float32)    # [N, dim, C]
        ms = jnp.sum(xk * xk, axis=(0, 1)) / N             # [C]
        if scaled:
            ms = ms * (1.0 / dim if dim > 0 else 0.0)
        outs.append(ms)
        off += dim
    return jnp.stack(outs, axis=0)                         # [K, C]


if __name__ == "__main__":
    key = jax.random.PRNGKey(0)

    # Irreps ~ "1x0e + 1x1o + 1x2e" -> component dims [1, 3, 5].
    irrep_dims = [1, 3, 5]
    D = sum(irrep_dims)

    # Case 1: basic small shape, single batch block, no tail masking.
    N, C = 6, 32
    x = jax.random.normal(key, (N, D, C), dtype=jnp.float32)
    out = jax.block_until_ready(batch_mean_squared_norm(x, irrep_dims, scaled=True))
    ref = _reference(x, irrep_dims, scaled=True)
    assert out.shape == (len(irrep_dims), C), out.shape
    np.testing.assert_allclose(np.asarray(out), np.asarray(ref), rtol=1e-5, atol=1e-5)

    # Case 2: force small batch blocks + inner chunking + in-kernel tail masking
    # (padded_Df = 16 here; tb = 4, b_chunk = 2, N = 6 -> 2 reduction steps, the
    # last block has 2 valid rows and 2 masked rows — no wrapper-side padding).
    out2 = jax.block_until_ready(
        batch_mean_squared_norm(x, irrep_dims, scaled=True,
                                block_bytes=4 * 16 * C * 4,
                                chunk_bytes=2 * 16 * C * 4))
    np.testing.assert_allclose(np.asarray(out2), np.asarray(ref), rtol=1e-5, atol=1e-5)

    # Case 3: sublane fold kicks in (N = 8 divisible by fold factor 8 for f32,
    # x viewed as [1, 72, 128]); also exercises scaled=False.
    x3 = jax.random.normal(jax.random.PRNGKey(1), (8, D, 128), dtype=jnp.float32)
    out3 = jax.block_until_ready(batch_mean_squared_norm(x3, irrep_dims, scaled=False))
    ref3 = _reference(x3, irrep_dims, scaled=False)
    np.testing.assert_allclose(np.asarray(out3), np.asarray(ref3), rtol=1e-5, atol=1e-5)

    # Case 4: lane-dense channels (C = 256); on a single-TC chip this is one
    # contiguous slab, on v7x it auto-splits into two contiguous 128-lane halves.
    x4 = jax.random.normal(jax.random.PRNGKey(2), (4, D, 256), dtype=jnp.float32)
    out4 = jax.block_until_ready(batch_mean_squared_norm(x4, irrep_dims, scaled=True))
    ref4 = _reference(x4, irrep_dims, scaled=True)
    np.testing.assert_allclose(np.asarray(out4), np.asarray(ref4), rtol=1e-5, atol=1e-5)

    print("KERNEL_OK")
</pallas_src>

<mosaic_0001>
module attributes {stable_mosaic.version = 11 : i64} {
  func.func @kernel(%arg0: i32, %arg1: i32, %arg2: memref<6x9x32xf32, #tpu.memory_space<vmem>>, %arg3: memref<3x9xf32, #tpu.memory_space<vmem>>, %arg4: memref<3x32xf32, #tpu.memory_space<vmem>>, %arg5: memref<9x32xf32, #tpu.memory_space<vmem>>) attributes {dimension_semantics = [#tpu.dimension_semantics<parallel>, #tpu.dimension_semantics<arbitrary>], iteration_bounds = array<i64: 1, 1>, scalar_prefetch = 0 : i64, scratch_operands = 1 : i64, tpu.core_type = #tpu.core_type<tc>, window_params = [{transform_indices = @transform_0, window_bounds = array<i64: 6, 9, 32>}, {pipeline_mode = #tpu.pipeline_mode<synchronous>, transform_indices = @transform_1, window_bounds = array<i64: 3, 9>}, {transform_indices = @transform_2, window_bounds = array<i64: 3, 32>}]} {
    %c0_i32 = arith.constant 0 : i32
    %0 = arith.cmpi eq, %arg1, %c0_i32 : i32
    %1 = arith.extui %0 : i1 to i32
    %c0_i32_0 = arith.constant 0 : i32
    %2 = arith.cmpi ne, %1, %c0_i32_0 : i32
    scf.if %2 {
      %cst_9 = arith.constant 0.000000e+00 : f32
      %12 = vector.broadcast %cst_9 : f32 to vector<9x32xf32>
      %c0_10 = arith.constant 0 : index
      %c0_11 = arith.constant 0 : index
      %13 = vector.load %arg5[%c0_10, %c0_11] : memref<9x32xf32, #tpu.memory_space<vmem>>, vector<9x32xf32>
      tpu.vector_store %arg5[%c0_10, %c0_11], %12 {strides = array<i32>} : memref<9x32xf32, #tpu.memory_space<vmem>>, vector<9x32xf32>,
    } else {
    }
    %c0 = arith.constant 0 : index
    %c0_1 = arith.constant 0 : index
    %3 = vector.load %arg5[%c0, %c0_1] : memref<9x32xf32, #tpu.memory_space<vmem>>, vector<9x32xf32>
    %c0_2 = arith.constant 0 : index
    %c0_3 = arith.constant 0 : index
    %c0_4 = arith.constant 0 : index
    %4 = vector.load %arg2[%c0_2, %c0_3, %c0_4] : memref<6x9x32xf32, #tpu.memory_space<vmem>>, vector<6x9x32xf32>
    %5 = arith.mulf %4, %4 : vector<6x9x32xf32>
    %cst = arith.constant dense<0.000000e+00> : vector<9x32xf32>
    %6 = vector.multi_reduction <add>, %5, %cst [0] : vector<6x9x32xf32> to vector<9x32xf32>
    %7 = arith.addf %3, %6 : vector<9x32xf32>
    %c0_5 = arith.constant 0 : index
    %c0_6 = arith.constant 0 : index
    %8 = vector.load %arg5[%c0_5, %c0_6] : memref<9x32xf32, #tpu.memory_space<vmem>>, vector<9x32xf32>
    tpu.vector_store %arg5[%c0_5, %c0_6], %7 {strides = array<i32>} : memref<9x32xf32, #tpu.memory_space<vmem>>, vector<9x32xf32>,
    %c0_i32_7 = arith.constant 0 : i32
    %9 = arith.cmpi eq, %arg1, %c0_i32_7 : i32
    %10 = arith.extui %9 : i1 to i32
    %c0_i32_8 = arith.constant 0 : i32
    %11 = arith.cmpi ne, %10, %c0_i32_8 : i32
    scf.if %11 {
      %c0_9 = arith.constant 0 : index
      %c0_10 = arith.constant 0 : index
      %12 = vector.load %arg3[%c0_9, %c0_10] : memref<3x9xf32, #tpu.memory_space<vmem>>, vector<3x9xf32>
      %c0_11 = arith.constant 0 : index
      %c0_12 = arith.constant 0 : index
      %13 = vector.load %arg5[%c0_11, %c0_12] : memref<9x32xf32, #tpu.memory_space<vmem>>, vector<9x32xf32>
      %cst_13 = arith.constant dense<0.000000e+00> : vector<3x32xf32>
      %14 = tpu.matmul %12, %13, %cst_13 {dimension_numbers = #tpu.dot_dimension_numbers<[1], [0], [0], [1], [0, 0, 1, 1], [], []>} : vector<3x9xf32>, vector<9x32xf32>, vector<3x32xf32> -> vector<3x32xf32>
      %c0_14 = arith.constant 0 : index
      %c0_15 = arith.constant 0 : index
      %15 = vector.load %arg4[%c0_14, %c0_15] : memref<3x32xf32, #tpu.memory_space<vmem>>, vector<3x32xf32>
      tpu.vector_store %arg4[%c0_14, %c0_15], %14 {strides = array<i32>} : memref<3x32xf32, #tpu.memory_space<vmem>>, vector<3x32xf32>,
    } else {
    }
    return
  }
  func.func @transform_0(%arg0: i32, %arg1: i32) -> (i32, i32, i32) {
    %c0_i32 = arith.constant 0 : i32
    %c0_i32_0 = arith.constant 0 : i32
    return %arg1, %c0_i32, %arg0 : i32, i32, i32
  }
  func.func @transform_1(%arg0: i32, %arg1: i32) -> (i32, i32) {
    %c0_i32 = arith.constant 0 : i32
    %c0_i32_0 = arith.constant 0 : i32
    %c0_i32_1 = arith.constant 0 : i32
    return %c0_i32, %c0_i32_0 : i32, i32
  }
  func.func @transform_2(%arg0: i32, %arg1: i32) -> (i32, i32) {
    %c0_i32 = arith.constant 0 : i32
    %c0_i32_0 = arith.constant 0 : i32
    return %c0_i32, %arg0 : i32, i32
  }
}

</mosaic_0001>

<llo_original>
// kernel: tpu_custom_call.1
$region0: #{tpu_custom_call.1}
  #allocation0 [shape = 'u32[]', space=smem, size = 0x4, offset = 0x4, fixed_abs, tag = 'smem constant byte address 0x4 - core index']
  #allocation1 [shape = 'u32[72,128]{1,0:T(1,128)}', space=vmem, size = 0x9000, scoped, tag = 'internal scratch']
  #allocation2 [shape = 'f32[9,32]{1,0:T(8,128)}', space=vmem, size = 0x2000, scoped, tag = 'scratch operand']
  %s0 = inlined_call_operand.vmem [shape: f32[6,9,32], index: 0, kind: input, shape index: {}]
  %s1 = inlined_call_operand.vmem [shape: f32[3,9], index: 1, kind: input, shape index: {}]
  %s2 = inlined_call_operand.hbm [shape: f32[3,32], index: 2, kind: output, shape index: {}]
  %s3 = sld [smem:[#allocation0]]
  $region26: #{tpu_custom_call.1} parent=0
    _
  %s5 = ssub.s32 1, %s3
  %s6 = scalar_select 0, %s5, %s3
  $region1: #{tpu_custom_call.1} parent=0
    #allocation3 [shape = 'u8[2048]{0}', space=vmem, size = 0x800, scoped, tag = 'output window, operand 0, single buffered']
    #allocation4 [shape = 's32[1]{0}', space=sflag, size = 0x4, scoped, tag = 'scoped memory for tpu_custom_call.1']
    %7 = vsyncpa [#allocation4], 0
    // Predicated region
    $region2: #{tpu_custom_call.1} parent=1 // pred_check
      _
    $region3: #{tpu_custom_call.1} parent=1 // pred_check_branch
      %9 = sbr.rel (0) target = $region5
    $region4: #{tpu_custom_call.1} parent=1 // pred_region
      _
    $region5: #{tpu_custom_call.1} parent=1 // pred_fallthru
      _
    // Predicated region
    $region6: #{tpu_custom_call.1} parent=1 // pred_check
      _
    $region7: #{tpu_custom_call.1} parent=1 // pred_check_branch
      %11 = sbr.rel (0) target = $region9
    $region8: #{tpu_custom_call.1} parent=1 // pred_region
      _
    $region9: #{tpu_custom_call.1} parent=1 // pred_fallthru
      _
    %p12 = scmp.eq.s32.totalorder 0, 0
    // Predicated region
    $region10: #{tpu_custom_call.1} parent=1 // pred_check
      %p13 = pneg %p12
    $region11: #{tpu_custom_call.1} parent=1 // pred_check_branch
      %15 = sbr.rel (%p13) target = $region13
    $region12: #{tpu_custom_call.1} parent=1 // pred_region
      %vm16 = vcmask 261120
      %17 = vst.msk [vmem:[#allocation2] sm:$0xff] %vm16, 0.0
      %vm18 = vcmask 253952
      %19 = vst.msk [vmem:[#allocation2 + $0x8] sm:$0x1] %vm18, 0.0
    $region13: #{tpu_custom_call.1} parent=1 // pred_fallthru
      _
    %v20 = vld [vmem:[#allocation2] sm:$0xff]
    %v21 = vld [vmem:[#allocation2 + $0x8] sm:$0x1]
    %v22 = vld [vmem:[%s0] sm:$0xff]
    %v23 = vld [vmem:[%s0 + $0x8] sm:$0x1]
    %v24 = vld [vmem:[%s0 + $0x10] sm:$0xff]
    %v25 = vld [vmem:[%s0 + $0x18] sm:$0x1]
    %v26 = vld [vmem:[%s0 + $0x20] sm:$0xff]
    %v27 = vld [vmem:[%s0 + $0x28] sm:$0x1]
    %v28 = vld [vmem:[%s0 + $0x30] sm:$0xff]
    %v29 = vld [vmem:[%s0 + $0x38] sm:$0x1]
    %v30 = vld [vmem:[%s0 + $0x40] sm:$0xff]
    %v31 = vld [vmem:[%s0 + $0x48] sm:$0x1]
    %v32 = vld [vmem:[%s0 + $0x50] sm:$0xff]
    %v33 = vld [vmem:[%s0 + $0x58] sm:$0x1]
    %v34 = vmul.f32 %v22, %v22
    %v35 = vmul.f32 %v23, %v23
    %v36 = vmul.f32 %v24, %v24
    %v37 = vmul.f32 %v25, %v25
    %v38 = vmul.f32 %v26, %v26
    %v39 = vmul.f32 %v27, %v27
    %v40 = vmul.f32 %v28, %v28
    %v41 = vmul.f32 %v29, %v29
    %v42 = vmul.f32 %v30, %v30
    %v43 = vmul.f32 %v31, %v31
    %v44 = vmul.f32 %v32, %v32
    %v45 = vmul.f32 %v33, %v33
    %vm46 = vcmask 261120
    %v47 = vsel %vm46, %v34, 0.0
    %v48 = vsel %vm46, %v36, 0.0
    %v49 = vadd.f32 %v47, %v48
    %v50 = vsel %vm46, %v38, 0.0
    %v51 = vadd.f32 %v49, %v50
    %v52 = vsel %vm46, %v40, 0.0
    %v53 = vadd.f32 %v51, %v52
    %v54 = vsel %vm46, %v42, 0.0
    %v55 = vadd.f32 %v53, %v54
    %v56 = vsel %vm46, %v44, 0.0
    %v57 = vadd.f32 %v55, %v56
    %vm58 = vcmask 253952
    %v59 = vsel %vm58, %v35, 0.0
    %v60 = vsel %vm58, %v37, 0.0
    %v61 = vadd.f32 %v59, %v60
    %v62 = vsel %vm58, %v39, 0.0
    %v63 = vadd.f32 %v61, %v62
    %v64 = vsel %vm58, %v41, 0.0
    %v65 = vadd.f32 %v63, %v64
    %v66 = vsel %vm58, %v43, 0.0
    %v67 = vadd.f32 %v65, %v66
    %v68 = vsel %vm58, %v45, 0.0
    %v69 = vadd.f32 %v67, %v68
    %v70 = vadd.f32 %v20, %v57
    %v71 = vadd.f32 %v21, %v69
    %72 = vst.msk [vmem:[#allocation2] sm:$0xff] %vm46, %v70
    %73 = vst.msk [vmem:[#allocation2 + $0x8] sm:$0x1] %vm58, %v71
    // Predicated region
    $region14: #{tpu_custom_call.1} parent=1 // pred_check
      %p74 = pneg %p12
    $region15: #{tpu_custom_call.1} parent=1 // pred_check_branch
      %76 = sbr.rel (%p74) target = $region17
    $region16: #{tpu_custom_call.1} parent=1 // pred_region
      %v77 = vld [vmem:[%s1] sm:$0x7]
      %v78 = vld [vmem:[#allocation2] sm:$0xff]
      %v79 = vld [vmem:[#allocation2 + $0x8] sm:$0x1]
      %vm80 = vcmask 72704
      %v82 = vsel %vm80, %v77, 0
      %vm84 = vcmask 1040384
      %v86 = vsel %vm84, %v79, 0
      %88 = vmatpush.msra.mxu0 0.0
      %89 = vmatpush.msra.mxu0 0.0
      %90 = vmatpush.msra.mxu0 0.0
      %91 = vmatpush.msra.mxu0 0.0
      %92 = vmatpush.msra.mxu0 0.0
      %93 = vmatpush.msra.mxu0 0.0
      %94 = vmatpush.msra.mxu0 0.0
      %95 = vmatpush.msra.mxu0 0.0
      %96 = vmatpush.msra.mxu0 0.0
      %97 = vmatpush.msra.mxu0 0.0
      %98 = vmatpush.msra.mxu0 0.0
      %99 = vmatpush.msra.mxu0 0.0
      %100 = vmatpush.msra.mxu0 0.0
      %101 = vmatpush.msra.mxu0 0.0
      %102 = vmatpush.msra.mxu0 %v86
      %103 = vmatpush.msra.mxu0 %v78
      %104 = vmatmul.f32.gmra.mxu0 %v82
      %v105 = vpop.f32.mrf.mxu0
      %v106 = vadd.f32 0.0, %v105
      %107 = vdwg.mxu0
      %vm108 = vcmask 256000
      %109 = vst.msk [vmem:[#allocation3] sm:$0x7] %vm108, %v106
    $region17: #{tpu_custom_call.1} parent=1 // pred_fallthru
      _
    // Predicated region
    $region18: #{tpu_custom_call.1} parent=1 // pred_check
      _
    $region19: #{tpu_custom_call.1} parent=1 // pred_check_branch
      %111 = sbr.rel (0) target = $region21
    $region20: #{tpu_custom_call.1} parent=1 // pred_region
      %113 = vsyncadd [#allocation4], 0
      %s115 = sshll.u32 [#allocation3], 4
      %s116 = int_to_ptr.vmem [resolvable:$true] %s115
      %s117 = sshll.u32 %s2, 4
      %s118 = int_to_ptr.hbm [resolvable:$true] %s117
      %120 = dma.vmem_to_hbm [thread:$0]  %s116, 64, %s118, [#allocation4]
    $region21: #{tpu_custom_call.1} parent=1 // pred_fallthru
      _
    // Predicated region
    $region22: #{tpu_custom_call.1} parent=1 // pred_check
      _
    $region23: #{tpu_custom_call.1} parent=1 // pred_check_branch
      %122 = sbr.rel (0) target = $region25
    $region24: #{tpu_custom_call.1} parent=1 // pred_region
      %124 = dma.done [#allocation4], 64
    $region25: #{tpu_custom_call.1} parent=1 // pred_fallthru
      _
    %125 = vsyncpa [#allocation4], 1

</llo_original>
